<compile_context>
chip_gen: v7x
topology: tpu7x:2x2x1
jax: 0.10.0
libtpu: 0.0.40
codegen_flags: <defaults>
</compile_context>

<pallas_src>
import jax
import jax.numpy as jnp
from jax import lax
from jax.experimental import pallas as pl
from jax.experimental.pallas import tpu as pltpu

LANES = 128


def _make_dice_kernel(C, n_row_blocks, tile_rows, rows_total, T, total_blocks):
    """Partial-sum kernel. All arguments are static Python ints.

    Grid is (N, P, T); the global row-block index is rb = p*T + t.
    """
    need_block_guard = total_blocks != n_row_blocks          # P*T > n_row_blocks
    tail_rows = rows_total - (n_row_blocks - 1) * tile_rows   # valid rows, last block
    need_tail_mask = tail_rows != tile_rows

    def kernel(x_ref, y_ref, inter_ref, sx_ref, sy_ref):
        p = pl.program_id(1)
        t = pl.program_id(2)
        rb = p * T + t

        @pl.when(t == 0)
        def _init():
            inter_ref[...] = jnp.zeros_like(inter_ref)
            sx_ref[...] = jnp.zeros_like(sx_ref)
            sy_ref[...] = jnp.zeros_like(sy_ref)

        def accumulate(row_valid):
            # Labels: int8 in HBM/VMEM, widened to int32 only for the compares.
            yl = y_ref[...].astype(jnp.int32)                  # (tile_rows, 128)
            if row_valid is not None:
                yl = jnp.where(row_valid, yl, -1)              # never matches a class
            inter_rows, sx_rows, sy_rows = [], [], []
            for i in range(C):                                 # unrolled: C scalar compares
                xi = x_ref[i].astype(jnp.float32)              # (tile_rows, 128)
                if row_valid is not None:
                    xi = jnp.where(row_valid, xi, 0.0)
                m = yl == i                                    # bool (tile_rows, 128)
                inter_rows.append(
                    jnp.sum(jnp.where(m, xi, 0.0), axis=0, keepdims=True))
                sx_rows.append(jnp.sum(xi, axis=0, keepdims=True))
                sy_rows.append(
                    jnp.sum(jnp.where(m, 1.0, 0.0), axis=0, keepdims=True))
            inter_ref[...] += jnp.concatenate(inter_rows, axis=0)   # (C, 128)
            sx_ref[...] += jnp.concatenate(sx_rows, axis=0)
            sy_ref[...] += jnp.concatenate(sy_rows, axis=0)

        def do_block():
            if need_tail_mask:
                @pl.when(rb < n_row_blocks - 1)
                def _full():
                    accumulate(None)

                @pl.when(rb == n_row_blocks - 1)
                def _tail():
                    row_id = lax.broadcasted_iota(jnp.int32, (tile_rows, LANES), 0)
                    accumulate(row_id < tail_rows)
            else:
                accumulate(None)

        if need_block_guard:
            @pl.when(rb < n_row_blocks)
            def _active():
                do_block()
        else:
            do_block()

    return kernel


def dice_loss(x, y, weights=(0.1, 1.0, 1.0, 0.0, 1.0), *, tile_rows=None,
              target_tile_bytes=8 << 20):
    """x: (N, C, D, H, W) float (f32 or bf16); y: (N, 1, D, H, W) int labels in [0, C)."""
    N, C, D, H, W = x.shape
    assert y.shape == (N, 1, D, H, W)
    assert C == len(weights)
    assert C <= 127, "labels must fit int8 (sentinel value C used for padding)"

    M = D * H * W
    assert M < 2**31
    Mr = pl.cdiv(M, LANES)
    pad = Mr * LANES - M

    x3 = x.reshape(N, C, M)                               # free reshape, no transpose
    yl = y.reshape(N, M).astype(jnp.int8)                 # 1 byte/label through HBM
    if pad:
        # TODO(synk): this pad is a copy; only hit when D*H*W % 128 != 0.
        x3 = jnp.pad(x3, ((0, 0), (0, 0), (0, pad)))
        yl = jnp.pad(yl, ((0, 0), (0, pad)), constant_values=C)  # sentinel class
    x4 = x3.reshape(N, C, Mr, LANES)                      # dense (rows,128) layout
    y3 = yl.reshape(N, Mr, LANES)

    # Row-tile: multiple of 32 (aligns f32/bf16 x and int8 labels) or full extent.
    itemsize = jnp.dtype(x.dtype).itemsize
    if Mr <= 32:
        tr = Mr
    else:
        tr = (target_tile_bytes // (C * LANES * itemsize)) if tile_rows is None \
            else int(tile_rows)
        tr = max(32, (tr // 32) * 32)
        tr = min(tr, Mr)

    n_row_blocks = pl.cdiv(Mr, tr)
    # Split the volume over a second parallel axis when the batch can't feed
    # both TensorCores (v7x); no effect on single-core chips.
    P = 2 if (N == 1 and n_row_blocks >= 2) else 1
    T = pl.cdiv(n_row_blocks, P)
    total_blocks = P * T

    kernel = _make_dice_kernel(C, n_row_blocks, tr, Mr, T, total_blocks)

    def x_index(n, p, t):
        rb = jnp.minimum(p * T + t, n_row_blocks - 1)
        return (n, 0, rb, 0)

    def y_index(n, p, t):
        rb = jnp.minimum(p * T + t, n_row_blocks - 1)
        return (n, rb, 0)

    out_spec = pl.BlockSpec((None, None, C, LANES), lambda n, p, t: (n, p, 0, 0))
    out_sds = jax.ShapeDtypeStruct((N, P, C, LANES), jnp.float32)

    x_tile_bytes = C * tr * LANES * itemsize
    y_tile_bytes = tr * LANES                              # int8
    out_bytes = 3 * C * LANES * 4
    needed = 2 * (x_tile_bytes + y_tile_bytes) + 2 * out_bytes + (4 << 20)
    vmem_limit = int(min(max(needed, 32 << 20), 48 << 20))

    cost = pl.CostEstimate(
        flops=int(6 * N * C * M),
        transcendentals=0,
        bytes_accessed=int(x4.size * itemsize + y3.size + 3 * N * P * C * LANES * 4),
    )

    inter_p, sx_p, sy_p = pl.pallas_call(
        kernel,
        out_shape=(out_sds, out_sds, out_sds),
        grid_spec=pltpu.PrefetchScalarGridSpec(
            num_scalar_prefetch=0,
            grid=(N, P, T),
            in_specs=[
                pl.BlockSpec((None, C, tr, LANES), x_index),   # activations tile
                pl.BlockSpec((None, tr, LANES), y_index),      # int8 labels tile
            ],
            out_specs=(out_spec, out_spec, out_spec),
        ),
        compiler_params=pltpu.CompilerParams(
            dimension_semantics=("parallel", "parallel", "arbitrary"),
            vmem_limit_bytes=vmem_limit),
        cost_estimate=cost,
    )(x4, y3)

    # Tiny epilogue in plain JAX (eps added once per class, after combining
    # per-batch / per-core-split partials) — matches the PyTorch module.
    w = jnp.asarray(weights, dtype=jnp.float32)
    eps = jnp.float32(1.0)
    inter = inter_p.sum(axis=(0, 1, 3))
    sx = sx_p.sum(axis=(0, 1, 3))
    sy = sy_p.sum(axis=(0, 1, 3))
    per_class = w * (2.0 * (inter + eps) / (sx + sy + eps))
    loss = -jnp.sum(per_class) / jnp.sum(w)
    return loss.reshape(1)          # PyTorch forward returns a shape-(1,) tensor


def dice_loss_ref(x, y, weights=(0.1, 1.0, 1.0, 0.0, 1.0)):
    """Pure-JAX reference matching the PyTorch module exactly."""
    w = jnp.asarray(weights, dtype=jnp.float32)
    C = w.shape[0]
    eps = jnp.float32(1.0)
    yoh = jax.nn.one_hot(y[:, 0], C, axis=1, dtype=jnp.float32)   # (N,C,D,H,W)
    loss = jnp.float32(0.0)
    for i in range(C):
        x_i = x[:, i].astype(jnp.float32)
        y_i = yoh[:, i]
        inter = jnp.sum(x_i * y_i) + eps
        union = jnp.sum(x_i) + jnp.sum(y_i) + eps
        loss = loss - (2.0 * inter / union) * w[i]
    return (loss / jnp.sum(w)).reshape(1)


if __name__ == "__main__":
    key = jax.random.PRNGKey(0)
    weights = (0.1, 1.0, 1.0, 0.0, 1.0)
    C = len(weights)

    def make_inputs(k, N, D, H, W, dtype=jnp.float32):
        kx, ky = jax.random.split(k)
        x = jax.nn.softmax(
            jax.random.normal(kx, (N, C, D, H, W), jnp.float32), axis=1).astype(dtype)
        y = jax.random.randint(ky, (N, 1, D, H, W), 0, C, dtype=jnp.int32)
        return x, y

    k1, k2, k3, k4 = jax.random.split(key, 4)

    # 1) Default path: N=2, M=2048 -> Mr=16, single row-block, batch-parallel.
    x, y = make_inputs(k1, 2, 8, 16, 16)
    out = dice_loss(x, y, weights)
    jax.block_until_ready(out)
    ref = dice_loss_ref(x, y, weights)
    assert jnp.allclose(out, ref, atol=1e-5, rtol=1e-5), (out, ref)

    # 2) N=1, forced small row-tile: exercises the P=2 split, the ragged-tail
    #    mask and the extra-block guard (Mr=72, tile_rows=32 -> 3 blocks, P*T=4).
    x, y = make_inputs(k2, 1, 8, 36, 32)
    out = dice_loss(x, y, weights, tile_rows=32)
    jax.block_until_ready(out)
    ref = dice_loss_ref(x, y, weights)
    assert jnp.allclose(out, ref, atol=1e-5, rtol=1e-5), (out, ref)

    # 3) D*H*W not divisible by 128: exercises the host-side pad + label sentinel.
    x, y = make_inputs(k3, 2, 5, 7, 9)
    out = dice_loss(x, y, weights)
    jax.block_until_ready(out)
    ref = dice_loss_ref(x, y, weights)
    assert jnp.allclose(out, ref, atol=1e-5, rtol=1e-5), (out, ref)

    # 4) bf16 activations (in-kernel f32 cast path).
    x, y = make_inputs(k4, 2, 8, 16, 16, dtype=jnp.bfloat16)
    out = dice_loss(x, y, weights)
    jax.block_until_ready(out)
    ref = dice_loss_ref(x.astype(jnp.float32), y, weights)
    assert jnp.allclose(out, ref, atol=1e-3, rtol=1e-3), (out, ref)

    print("KERNEL_OK")
</pallas_src>

<mosaic_0001>
module attributes {stable_mosaic.version = 11 : i64} {
  func.func @kernel(%arg0: i32, %arg1: i32, %arg2: i32, %arg3: memref<1x5x16x128xf32, #tpu.memory_space<vmem>>, %arg4: memref<1x16x128xi8, #tpu.memory_space<vmem>>, %arg5: memref<1x1x5x128xf32, #tpu.memory_space<vmem>>, %arg6: memref<1x1x5x128xf32, #tpu.memory_space<vmem>>, %arg7: memref<1x1x5x128xf32, #tpu.memory_space<vmem>>) attributes {dimension_semantics = [#tpu.dimension_semantics<parallel>, #tpu.dimension_semantics<parallel>, #tpu.dimension_semantics<arbitrary>], iteration_bounds = array<i64: 2, 1, 1>, scalar_prefetch = 0 : i64, scratch_operands = 0 : i64, tpu.core_type = #tpu.core_type<tc>, window_params = [{transform_indices = @transform_0, window_bounds = array<i64: 1, 5, 16, 128>}, {transform_indices = @transform_1, window_bounds = array<i64: 1, 16, 128>}, {transform_indices = @transform_2, window_bounds = array<i64: 1, 1, 5, 128>}, {transform_indices = @transform_3, window_bounds = array<i64: 1, 1, 5, 128>}, {transform_indices = @transform_4, window_bounds = array<i64: 1, 1, 5, 128>}]} {
    %c0_i32 = arith.constant 0 : i32
    %0 = arith.cmpi eq, %arg2, %c0_i32 : i32
    %1 = arith.extui %0 : i1 to i32
    %c0_i32_0 = arith.constant 0 : i32
    %2 = arith.cmpi ne, %1, %c0_i32_0 : i32
    scf.if %2 {
      %cst_73 = arith.constant 0.000000e+00 : f32
      %102 = vector.broadcast %cst_73 : f32 to vector<5x128xf32>
      %c0_74 = arith.constant 0 : index
      %c0_75 = arith.constant 0 : index
      %c0_76 = arith.constant 0 : index
      %c0_77 = arith.constant 0 : index
      %103 = vector.load %arg5[%c0_74, %c0_75, %c0_76, %c0_77] : memref<1x1x5x128xf32, #tpu.memory_space<vmem>>, vector<1x1x5x128xf32>
      %104 = vector.shape_cast %103 : vector<1x1x5x128xf32> to vector<5x128xf32>
      %105 = vector.shape_cast %102 : vector<5x128xf32> to vector<1x1x5x128xf32>
      tpu.vector_store %arg5[%c0_74, %c0_75, %c0_76, %c0_77], %105 {strides = array<i32>} : memref<1x1x5x128xf32, #tpu.memory_space<vmem>>, vector<1x1x5x128xf32>,
      %cst_78 = arith.constant 0.000000e+00 : f32
      %106 = vector.broadcast %cst_78 : f32 to vector<5x128xf32>
      %c0_79 = arith.constant 0 : index
      %c0_80 = arith.constant 0 : index
      %c0_81 = arith.constant 0 : index
      %c0_82 = arith.constant 0 : index
      %107 = vector.load %arg6[%c0_79, %c0_80, %c0_81, %c0_82] : memref<1x1x5x128xf32, #tpu.memory_space<vmem>>, vector<1x1x5x128xf32>
      %108 = vector.shape_cast %107 : vector<1x1x5x128xf32> to vector<5x128xf32>
      %109 = vector.shape_cast %106 : vector<5x128xf32> to vector<1x1x5x128xf32>
      tpu.vector_store %arg6[%c0_79, %c0_80, %c0_81, %c0_82], %109 {strides = array<i32>} : memref<1x1x5x128xf32, #tpu.memory_space<vmem>>, vector<1x1x5x128xf32>,
      %cst_83 = arith.constant 0.000000e+00 : f32
      %110 = vector.broadcast %cst_83 : f32 to vector<5x128xf32>
      %c0_84 = arith.constant 0 : index
      %c0_85 = arith.constant 0 : index
      %c0_86 = arith.constant 0 : index
      %c0_87 = arith.constant 0 : index
      %111 = vector.load %arg7[%c0_84, %c0_85, %c0_86, %c0_87] : memref<1x1x5x128xf32, #tpu.memory_space<vmem>>, vector<1x1x5x128xf32>
      %112 = vector.shape_cast %111 : vector<1x1x5x128xf32> to vector<5x128xf32>
      %113 = vector.shape_cast %110 : vector<5x128xf32> to vector<1x1x5x128xf32>
      tpu.vector_store %arg7[%c0_84, %c0_85, %c0_86, %c0_87], %113 {strides = array<i32>} : memref<1x1x5x128xf32, #tpu.memory_space<vmem>>, vector<1x1x5x128xf32>,
    } else {
    }
    %c0 = arith.constant 0 : index
    %c0_1 = arith.constant 0 : index
    %c0_2 = arith.constant 0 : index
    %3 = vector.load %arg4[%c0, %c0_1, %c0_2] : memref<1x16x128xi8, #tpu.memory_space<vmem>>, vector<1x16x128xi8>
    %4 = vector.shape_cast %3 : vector<1x16x128xi8> to vector<16x128xi8>
    %5 = arith.extsi %4 : vector<16x128xi8> to vector<16x128xi32>
    %c0_3 = arith.constant 0 : index
    %c0_4 = arith.constant 0 : index
    %c0_5 = arith.constant 0 : index
    %c0_6 = arith.constant 0 : index
    %6 = vector.load %arg3[%c0_3, %c0_4, %c0_5, %c0_6] : memref<1x5x16x128xf32, #tpu.memory_space<vmem>>, vector<1x1x16x128xf32>
    %7 = vector.shape_cast %6 : vector<1x1x16x128xf32> to vector<16x128xf32>
    %c0_i32_7 = arith.constant 0 : i32
    %8 = vector.broadcast %c0_i32_7 : i32 to vector<16x128xi32>
    %9 = arith.cmpi eq, %5, %8 : vector<16x128xi32>
    %cst = arith.constant 0.000000e+00 : f32
    %10 = vector.broadcast %cst : f32 to vector<16x128xf32>
    %11 = arith.select %9, %7, %10 : vector<16x128xi1>, vector<16x128xf32>
    %cst_8 = arith.constant dense<0.000000e+00> : vector<128xf32>
    %12 = vector.multi_reduction <add>, %11, %cst_8 [0] : vector<16x128xf32> to vector<128xf32>
    %13 = vector.shape_cast %12 : vector<128xf32> to vector<1x128xf32>
    %cst_9 = arith.constant dense<0.000000e+00> : vector<128xf32>
    %14 = vector.multi_reduction <add>, %7, %cst_9 [0] : vector<16x128xf32> to vector<128xf32>
    %15 = vector.shape_cast %14 : vector<128xf32> to vector<1x128xf32>
    %cst_10 = arith.constant 1.000000e+00 : f32
    %cst_11 = arith.constant 0.000000e+00 : f32
    %16 = vector.broadcast %cst_10 : f32 to vector<16x128xf32>
    %17 = vector.broadcast %cst_11 : f32 to vector<16x128xf32>
    %18 = arith.select %9, %16, %17 : vector<16x128xi1>, vector<16x128xf32>
    %cst_12 = arith.constant dense<0.000000e+00> : vector<128xf32>
    %19 = vector.multi_reduction <add>, %18, %cst_12 [0] : vector<16x128xf32> to vector<128xf32>
    %20 = vector.shape_cast %19 : vector<128xf32> to vector<1x128xf32>
    %c0_13 = arith.constant 0 : index
    %c1 = arith.constant 1 : index
    %c0_14 = arith.constant 0 : index
    %c0_15 = arith.constant 0 : index
    %21 = vector.load %arg3[%c0_13, %c1, %c0_14, %c0_15] : memref<1x5x16x128xf32, #tpu.memory_space<vmem>>, vector<1x1x16x128xf32>
    %22 = vector.shape_cast %21 : vector<1x1x16x128xf32> to vector<16x128xf32>
    %c1_i32 = arith.constant 1 : i32
    %23 = vector.broadcast %c1_i32 : i32 to vector<16x128xi32>
    %24 = arith.cmpi eq, %5, %23 : vector<16x128xi32>
    %cst_16 = arith.constant 0.000000e+00 : f32
    %25 = vector.broadcast %cst_16 : f32 to vector<16x128xf32>
    %26 = arith.select %24, %22, %25 : vector<16x128xi1>, vector<16x128xf32>
    %cst_17 = arith.constant dense<0.000000e+00> : vector<128xf32>
    %27 = vector.multi_reduction <add>, %26, %cst_17 [0] : vector<16x128xf32> to vector<128xf32>
    %28 = vector.shape_cast %27 : vector<128xf32> to vector<1x128xf32>
    %cst_18 = arith.constant dense<0.000000e+00> : vector<128xf32>
    %29 = vector.multi_reduction <add>, %22, %cst_18 [0] : vector<16x128xf32> to vector<128xf32>
    %30 = vector.shape_cast %29 : vector<128xf32> to vector<1x128xf32>
    %cst_19 = arith.constant 1.000000e+00 : f32
    %cst_20 = arith.constant 0.000000e+00 : f32
    %31 = vector.broadcast %cst_19 : f32 to vector<16x128xf32>
    %32 = vector.broadcast %cst_20 : f32 to vector<16x128xf32>
    %33 = arith.select %24, %31, %32 : vector<16x128xi1>, vector<16x128xf32>
    %cst_21 = arith.constant dense<0.000000e+00> : vector<128xf32>
    %34 = vector.multi_reduction <add>, %33, %cst_21 [0] : vector<16x128xf32> to vector<128xf32>
    %35 = vector.shape_cast %34 : vector<128xf32> to vector<1x128xf32>
    %c0_22 = arith.constant 0 : index
    %c2 = arith.constant 2 : index
    %c0_23 = arith.constant 0 : index
    %c0_24 = arith.constant 0 : index
    %36 = vector.load %arg3[%c0_22, %c2, %c0_23, %c0_24] : memref<1x5x16x128xf32, #tpu.memory_space<vmem>>, vector<1x1x16x128xf32>
    %37 = vector.shape_cast %36 : vector<1x1x16x128xf32> to vector<16x128xf32>
    %c2_i32 = arith.constant 2 : i32
    %38 = vector.broadcast %c2_i32 : i32 to vector<16x128xi32>
    %39 = arith.cmpi eq, %5, %38 : vector<16x128xi32>
    %cst_25 = arith.constant 0.000000e+00 : f32
    %40 = vector.broadcast %cst_25 : f32 to vector<16x128xf32>
    %41 = arith.select %39, %37, %40 : vector<16x128xi1>, vector<16x128xf32>
    %cst_26 = arith.constant dense<0.000000e+00> : vector<128xf32>
    %42 = vector.multi_reduction <add>, %41, %cst_26 [0] : vector<16x128xf32> to vector<128xf32>
    %43 = vector.shape_cast %42 : vector<128xf32> to vector<1x128xf32>
    %cst_27 = arith.constant dense<0.000000e+00> : vector<128xf32>
    %44 = vector.multi_reduction <add>, %37, %cst_27 [0] : vector<16x128xf32> to vector<128xf32>
    %45 = vector.shape_cast %44 : vector<128xf32> to vector<1x128xf32>
    %cst_28 = arith.constant 1.000000e+00 : f32
    %cst_29 = arith.constant 0.000000e+00 : f32
    %46 = vector.broadcast %cst_28 : f32 to vector<16x128xf32>
    %47 = vector.broadcast %cst_29 : f32 to vector<16x128xf32>
    %48 = arith.select %39, %46, %47 : vector<16x128xi1>, vector<16x128xf32>
    %cst_30 = arith.constant dense<0.000000e+00> : vector<128xf32>
    %49 = vector.multi_reduction <add>, %48, %cst_30 [0] : vector<16x128xf32> to vector<128xf32>
    %50 = vector.shape_cast %49 : vector<128xf32> to vector<1x128xf32>
    %c0_31 = arith.constant 0 : index
    %c3 = arith.constant 3 : index
    %c0_32 = arith.constant 0 : index
    %c0_33 = arith.constant 0 : index
    %51 = vector.load %arg3[%c0_31, %c3, %c0_32, %c0_33] : memref<1x5x16x128xf32, #tpu.memory_space<vmem>>, vector<1x1x16x128xf32>
    %52 = vector.shape_cast %51 : vector<1x1x16x128xf32> to vector<16x128xf32>
    %c3_i32 = arith.constant 3 : i32
    %53 = vector.broadcast %c3_i32 : i32 to vector<16x128xi32>
    %54 = arith.cmpi eq, %5, %53 : vector<16x128xi32>
    %cst_34 = arith.constant 0.000000e+00 : f32
    %55 = vector.broadcast %cst_34 : f32 to vector<16x128xf32>
    %56 = arith.select %54, %52, %55 : vector<16x128xi1>, vector<16x128xf32>
    %cst_35 = arith.constant dense<0.000000e+00> : vector<128xf32>
    %57 = vector.multi_reduction <add>, %56, %cst_35 [0] : vector<16x128xf32> to vector<128xf32>
    %58 = vector.shape_cast %57 : vector<128xf32> to vector<1x128xf32>
    %cst_36 = arith.constant dense<0.000000e+00> : vector<128xf32>
    %59 = vector.multi_reduction <add>, %52, %cst_36 [0] : vector<16x128xf32> to vector<128xf32>
    %60 = vector.shape_cast %59 : vector<128xf32> to vector<1x128xf32>
    %cst_37 = arith.constant 1.000000e+00 : f32
    %cst_38 = arith.constant 0.000000e+00 : f32
    %61 = vector.broadcast %cst_37 : f32 to vector<16x128xf32>
    %62 = vector.broadcast %cst_38 : f32 to vector<16x128xf32>
    %63 = arith.select %54, %61, %62 : vector<16x128xi1>, vector<16x128xf32>
    %cst_39 = arith.constant dense<0.000000e+00> : vector<128xf32>
    %64 = vector.multi_reduction <add>, %63, %cst_39 [0] : vector<16x128xf32> to vector<128xf32>
    %65 = vector.shape_cast %64 : vector<128xf32> to vector<1x128xf32>
    %c0_40 = arith.constant 0 : index
    %c4 = arith.constant 4 : index
    %c0_41 = arith.constant 0 : index
    %c0_42 = arith.constant 0 : index
    %66 = vector.load %arg3[%c0_40, %c4, %c0_41, %c0_42] : memref<1x5x16x128xf32, #tpu.memory_space<vmem>>, vector<1x1x16x128xf32>
    %67 = vector.shape_cast %66 : vector<1x1x16x128xf32> to vector<16x128xf32>
    %c4_i32 = arith.constant 4 : i32
    %68 = vector.broadcast %c4_i32 : i32 to vector<16x128xi32>
    %69 = arith.cmpi eq, %5, %68 : vector<16x128xi32>
    %cst_43 = arith.constant 0.000000e+00 : f32
    %70 = vector.broadcast %cst_43 : f32 to vector<16x128xf32>
    %71 = arith.select %69, %67, %70 : vector<16x128xi1>, vector<16x128xf32>
    %cst_44 = arith.constant dense<0.000000e+00> : vector<128xf32>
    %72 = vector.multi_reduction <add>, %71, %cst_44 [0] : vector<16x128xf32> to vector<128xf32>
    %73 = vector.shape_cast %72 : vector<128xf32> to vector<1x128xf32>
    %cst_45 = arith.constant dense<0.000000e+00> : vector<128xf32>
    %74 = vector.multi_reduction <add>, %67, %cst_45 [0] : vector<16x128xf32> to vector<128xf32>
    %75 = vector.shape_cast %74 : vector<128xf32> to vector<1x128xf32>
    %cst_46 = arith.constant 1.000000e+00 : f32
    %cst_47 = arith.constant 0.000000e+00 : f32
    %76 = vector.broadcast %cst_46 : f32 to vector<16x128xf32>
    %77 = vector.broadcast %cst_47 : f32 to vector<16x128xf32>
    %78 = arith.select %69, %76, %77 : vector<16x128xi1>, vector<16x128xf32>
    %cst_48 = arith.constant dense<0.000000e+00> : vector<128xf32>
    %79 = vector.multi_reduction <add>, %78, %cst_48 [0] : vector<16x128xf32> to vector<128xf32>
    %80 = vector.shape_cast %79 : vector<128xf32> to vector<1x128xf32>
    %c0_49 = arith.constant 0 : index
    %c0_50 = arith.constant 0 : index
    %c0_51 = arith.constant 0 : index
    %c0_52 = arith.constant 0 : index
    %81 = vector.load %arg5[%c0_49, %c0_50, %c0_51, %c0_52] : memref<1x1x5x128xf32, #tpu.memory_space<vmem>>, vector<1x1x5x128xf32>
    %82 = vector.shape_cast %81 : vector<1x1x5x128xf32> to vector<5x128xf32>
    %83 = tpu.concatenate %13, %28, %43, %58, %73 in 0 : vector<1x128xf32>, vector<1x128xf32>, vector<1x128xf32>, vector<1x128xf32>, vector<1x128xf32> -> vector<5x128xf32>
    %84 = arith.addf %82, %83 : vector<5x128xf32>
    %c0_53 = arith.constant 0 : index
    %c0_54 = arith.constant 0 : index
    %c0_55 = arith.constant 0 : index
    %c0_56 = arith.constant 0 : index
    %85 = vector.load %arg5[%c0_53, %c0_54, %c0_55, %c0_56] : memref<1x1x5x128xf32, #tpu.memory_space<vmem>>, vector<1x1x5x128xf32>
    %86 = vector.shape_cast %85 : vector<1x1x5x128xf32> to vector<5x128xf32>
    %87 = vector.shape_cast %84 : vector<5x128xf32> to vector<1x1x5x128xf32>
    tpu.vector_store %arg5[%c0_53, %c0_54, %c0_55, %c0_56], %87 {strides = array<i32>} : memref<1x1x5x128xf32, #tpu.memory_space<vmem>>, vector<1x1x5x128xf32>,
    %c0_57 = arith.constant 0 : index
    %c0_58 = arith.constant 0 : index
    %c0_59 = arith.constant 0 : index
    %c0_60 = arith.constant 0 : index
    %88 = vector.load %arg6[%c0_57, %c0_58, %c0_59, %c0_60] : memref<1x1x5x128xf32, #tpu.memory_space<vmem>>, vector<1x1x5x128xf32>
    %89 = vector.shape_cast %88 : vector<1x1x5x128xf32> to vector<5x128xf32>
    %90 = tpu.concatenate %15, %30, %45, %60, %75 in 0 : vector<1x128xf32>, vector<1x128xf32>, vector<1x128xf32>, vector<1x128xf32>, vector<1x128xf32> -> vector<5x128xf32>
    %91 = arith.addf %89, %90 : vector<5x128xf32>
    %c0_61 = arith.constant 0 : index
    %c0_62 = arith.constant 0 : index
    %c0_63 = arith.constant 0 : index
    %c0_64 = arith.constant 0 : index
    %92 = vector.load %arg6[%c0_61, %c0_62, %c0_63, %c0_64] : memref<1x1x5x128xf32, #tpu.memory_space<vmem>>, vector<1x1x5x128xf32>
    %93 = vector.shape_cast %92 : vector<1x1x5x128xf32> to vector<5x128xf32>
    %94 = vector.shape_cast %91 : vector<5x128xf32> to vector<1x1x5x128xf32>
    tpu.vector_store %arg6[%c0_61, %c0_62, %c0_63, %c0_64], %94 {strides = array<i32>} : memref<1x1x5x128xf32, #tpu.memory_space<vmem>>, vector<1x1x5x128xf32>,
    %c0_65 = arith.constant 0 : index
    %c0_66 = arith.constant 0 : index
    %c0_67 = arith.constant 0 : index
    %c0_68 = arith.constant 0 : index
    %95 = vector.load %arg7[%c0_65, %c0_66, %c0_67, %c0_68] : memref<1x1x5x128xf32, #tpu.memory_space<vmem>>, vector<1x1x5x128xf32>
    %96 = vector.shape_cast %95 : vector<1x1x5x128xf32> to vector<5x128xf32>
    %97 = tpu.concatenate %20, %35, %50, %65, %80 in 0 : vector<1x128xf32>, vector<1x128xf32>, vector<1x128xf32>, vector<1x128xf32>, vector<1x128xf32> -> vector<5x128xf32>
    %98 = arith.addf %96, %97 : vector<5x128xf32>
    %c0_69 = arith.constant 0 : index
    %c0_70 = arith.constant 0 : index
    %c0_71 = arith.constant 0 : index
    %c0_72 = arith.constant 0 : index
    %99 = vector.load %arg7[%c0_69, %c0_70, %c0_71, %c0_72] : memref<1x1x5x128xf32, #tpu.memory_space<vmem>>, vector<1x1x5x128xf32>
    %100 = vector.shape_cast %99 : vector<1x1x5x128xf32> to vector<5x128xf32>
    %101 = vector.shape_cast %98 : vector<5x128xf32> to vector<1x1x5x128xf32>
    tpu.vector_store %arg7[%c0_69, %c0_70, %c0_71, %c0_72], %101 {strides = array<i32>} : memref<1x1x5x128xf32, #tpu.memory_space<vmem>>, vector<1x1x5x128xf32>,
    return
  }
  func.func @transform_0(%arg0: i32, %arg1: i32, %arg2: i32) -> (i32, i32, i32, i32) {
    %c1_i32 = arith.constant 1 : i32
    %0 = arith.muli %arg1, %c1_i32 : i32
    %1 = arith.addi %0, %arg2 : i32
    %c0_i32 = arith.constant 0 : i32
    %2 = arith.minsi %1, %c0_i32 : i32
    %c0_i32_0 = arith.constant 0 : i32
    %c0_i32_1 = arith.constant 0 : i32
    %c0_i32_2 = arith.constant 0 : i32
    return %arg0, %c0_i32_0, %2, %c0_i32_1 : i32, i32, i32, i32
  }
  func.func @transform_1(%arg0: i32, %arg1: i32, %arg2: i32) -> (i32, i32, i32) {
    %c1_i32 = arith.constant 1 : i32
    %0 = arith.muli %arg1, %c1_i32 : i32
    %1 = arith.addi %0, %arg2 : i32
    %c0_i32 = arith.constant 0 : i32
    %2 = arith.minsi %1, %c0_i32 : i32
    %c0_i32_0 = arith.constant 0 : i32
    %c0_i32_1 = arith.constant 0 : i32
    return %arg0, %2, %c0_i32_0 : i32, i32, i32
  }
  func.func @transform_2(%arg0: i32, %arg1: i32, %arg2: i32) -> (i32, i32, i32, i32) {
    %c0_i32 = arith.constant 0 : i32
    %c0_i32_0 = arith.constant 0 : i32
    %c0_i32_1 = arith.constant 0 : i32
    return %arg0, %arg1, %c0_i32, %c0_i32_0 : i32, i32, i32, i32
  }
  func.func @transform_3(%arg0: i32, %arg1: i32, %arg2: i32) -> (i32, i32, i32, i32) {
    %c0_i32 = arith.constant 0 : i32
    %c0_i32_0 = arith.constant 0 : i32
    %c0_i32_1 = arith.constant 0 : i32
    return %arg0, %arg1, %c0_i32, %c0_i32_0 : i32, i32, i32, i32
  }
  func.func @transform_4(%arg0: i32, %arg1: i32, %arg2: i32) -> (i32, i32, i32, i32) {
    %c0_i32 = arith.constant 0 : i32
    %c0_i32_0 = arith.constant 0 : i32
    %c0_i32_1 = arith.constant 0 : i32
    return %arg0, %arg1, %c0_i32, %c0_i32_0 : i32, i32, i32, i32
  }
}

</mosaic_0001>

<llo_original>
// kernel: tpu_custom_call.1
$region0: #{tpu_custom_call.1}
  #allocation0 [shape = 'u32[]', space=smem, size = 0x4, offset = 0x4, fixed_abs, tag = 'smem constant byte address 0x4 - core index']
  #allocation1 [shape = 'u32[144,128]{1,0:T(1,128)}', space=vmem, size = 0x12000, scoped, tag = 'internal scratch']
  %s0 = inlined_call_operand.hbm [shape: f32[2,5,16,128], index: 0, kind: input, shape index: {}]
  %s1 = inlined_call_operand.hbm [shape: s8[2,16,128], index: 1, kind: input, shape index: {}]
  %s2 = inlined_call_operand.vmem [shape: f32[2,1,5,128], index: 2, kind: output, shape index: {0}]
  %s3 = inlined_call_operand.vmem [shape: f32[2,1,5,128], index: 3, kind: output, shape index: {1}]
  %s4 = inlined_call_operand.vmem [shape: f32[2,1,5,128], index: 4, kind: output, shape index: {2}]
  %5 = xla_tuple %s2, %s3, %s4
  %s6 = sld [smem:[#allocation0]]
  $region69: #{tpu_custom_call.1} parent=0
    _
  %s8 = ssub.s32 1, %s6
  %s9 = scalar_select 0, %s8, %s6
  $region1: #{tpu_custom_call.1} parent=0
    #allocation2 [shape = 'u8[81920]{0}', space=vmem, size = 0x14000, scoped, tag = 'input window, operand 0']
    #allocation3 [shape = 's32[2]{0}', space=sflag, size = 0x8, scoped, tag = 'scoped memory for tpu_custom_call.1']
    #allocation4 [shape = 'u8[4096]{0}', space=vmem, size = 0x1000, scoped, tag = 'input window, operand 1']
    #allocation5 [shape = 's32[2]{0}', space=sflag, size = 0x8, scoped, tag = 'scoped memory for tpu_custom_call.1']
    %10 = vsyncpa [#allocation3], 0
    %s11 = scalar_lea.sflag [#allocation3], 1
    %12 = vsyncpa %s11, 0
    %13 = vsyncpa [#allocation5], 0
    %s14 = scalar_lea.sflag [#allocation5], 1
    %15 = vsyncpa %s14, 0
    loop: start=0, step=1, limit=4
    $region2: #{tpu_custom_call.1} parent=1 // loop_pre_header
      _
    $region3: #{tpu_custom_call.1} parent=1 // loop_header
      %s17 = sphi 0, %s21
      %p18 = scmp.ge.s32.totalorder %s17, 4
      %s24 = sphi 0, %s43
      %s25 = sphi 0, %s39
      %s26 = sphi 0, %s35
      %s27 = sphi 0, %s24
      %s28 = sphi 0, %s25
      %s29 = sphi 0, %s26
      %s30 = sphi 0, %s27
      %s31 = sphi 0, %s28
      %s32 = sphi 0, %s29
      %s54 = sphi 0, %s56
      %s57 = sphi 0, %s54
      %s58 = sphi 0, %s57
      %s74 = sphi 0, %s58
      %s88 = sphi 0, %s90
      %s91 = sphi 0, %s88
      %s92 = sphi 0, %s91
      %s108 = sphi 0, %s92
      %s116 = sphi 0, %s118
      %s119 = sphi 0, %s116
      %s120 = sphi 0, %s119
      %s136 = sphi 0, %s120
      %s144 = sphi 0, %s146
      %s147 = sphi 0, %s144
      %s148 = sphi 0, %s147
      %s164 = sphi 0, %s148
      %s172 = sphi 0, %s174
      %s175 = sphi 0, %s172
      %s176 = sphi 0, %s175
      %s192 = sphi 0, %s176
    $region4: #{tpu_custom_call.1} parent=1 // loop_header_branch
      %20 = sbr.rel (%p18) target = $region8
    $region5: #{tpu_custom_call.1} parent=1 // loop_body
      %s22 = ssub.s32 %s17, 1
      %s23 = ssub.s32 %s17, 2
      %s33 = sadd.s32 1, %s26
      %p34 = scmp.ge.s32.totalorder %s33, 1
      %s35 = scalar_select %p34, 0, %s33
      %s36 = sadd.s32 1, %s25
      %s37 = scalar_select %p34, %s36, %s25
      %p38 = scmp.ge.s32.totalorder %s37, 1
      %s39 = scalar_select %p38, 0, %s37
      %s40 = sadd.s32 1, %s24
      %s41 = scalar_select %p38, %s40, %s24
      %p42 = scmp.ge.s32.totalorder %s41, 2
      %s43 = scalar_select %p42, 0, %s41
      %s44 = sadd.s32 %s25, %s26
      %p45 = scmp.lt.s32.totalorder %s44, 0
      %s46 = scalar_select %p45, %s44, 0
      %s47 = sadd.s32 %s39, %s35
      %p48 = scmp.lt.s32.totalorder %s47, 0
      %s49 = scalar_select %p48, %s47, 0
      %s50 = ssub.s32 %s24, %s43
      %s51 = ssub.s32 %s46, %s49
      %s52 = sor.u32 %s50, %s51
      %p53 = scmp.eq.s32.totalorder %s52, 0
      %s55 = sadd.s32 %s54, 1
      %s56 = scalar_select %p53, %s54, %s55
      %p59 = pneg %p53
      %p60 = scmp.eq.s32.totalorder %s17, 1
      %p61 = por %p59, %p60
      %p62 = scmp.ne.s32.totalorder %s54, %s57
      %p63 = scmp.eq.s32.totalorder %s17, 0
      %p64 = por %p62, %p63
      %p65 = scmp.ne.s32.totalorder %s54, %s57
      %p66 = scmp.eq.s32.totalorder %s22, 1
      %p67 = por %p65, %p66
      %p68 = scmp.ne.s32.totalorder %s57, %s58
      %p69 = scmp.eq.s32.totalorder %s22, 0
      %p70 = por %p68, %p69
      %p71 = scmp.ne.s32.totalorder %s57, %s58
      %p72 = scmp.eq.s32.totalorder %s23, 1
      %p73 = por %p71, %p72
      %p75 = scmp.ne.s32.totalorder %s58, %s74
      %p76 = scmp.eq.s32.totalorder %s23, 0
      %p77 = por %p75, %p76
      %s78 = sadd.s32 %s25, %s26
      %p79 = scmp.lt.s32.totalorder %s78, 0
      %s80 = scalar_select %p79, %s78, 0
      %s81 = sadd.s32 %s39, %s35
      %p82 = scmp.lt.s32.totalorder %s81, 0
      %s83 = scalar_select %p82, %s81, 0
      %s84 = ssub.s32 %s24, %s43
      %s85 = ssub.s32 %s80, %s83
      %s86 = sor.u32 %s84, %s85
      %p87 = scmp.eq.s32.totalorder %s86, 0
      %s89 = sadd.s32 %s88, 1
      %s90 = scalar_select %p87, %s88, %s89
      %p93 = pneg %p87
      %p94 = scmp.eq.s32.totalorder %s17, 1
      %p95 = por %p93, %p94
      %p96 = scmp.ne.s32.totalorder %s88, %s91
      %p97 = scmp.eq.s32.totalorder %s17, 0
      %p98 = por %p96, %p97
      %p99 = scmp.ne.s32.totalorder %s88, %s91
      %p100 = scmp.eq.s32.totalorder %s22, 1
      %p101 = por %p99, %p100
      %p102 = scmp.ne.s32.totalorder %s91, %s92
      %p103 = scmp.eq.s32.totalorder %s22, 0
      %p104 = por %p102, %p103
      %p105 = scmp.ne.s32.totalorder %s91, %s92
      %p106 = scmp.eq.s32.totalorder %s23, 1
      %p107 = por %p105, %p106
      %p109 = scmp.ne.s32.totalorder %s92, %s108
      %p110 = scmp.eq.s32.totalorder %s23, 0
      %p111 = por %p109, %p110
      %s112 = ssub.s32 %s24, %s43
      %s113 = ssub.s32 %s25, %s39
      %s114 = sor.u32 %s112, %s113
      %p115 = scmp.eq.s32.totalorder %s114, 0
      %s117 = sadd.s32 %s116, 1
      %s118 = scalar_select %p115, %s116, %s117
      %p121 = pneg %p115
      %p122 = scmp.eq.s32.totalorder %s17, 1
      %p123 = por %p121, %p122
      %p124 = scmp.ne.s32.totalorder %s116, %s119
      %p125 = scmp.eq.s32.totalorder %s17, 0
      %p126 = por %p124, %p125
      %p127 = scmp.ne.s32.totalorder %s116, %s119
      %p128 = scmp.eq.s32.totalorder %s22, 1
      %p129 = por %p127, %p128
      %p130 = scmp.ne.s32.totalorder %s119, %s120
      %p131 = scmp.eq.s32.totalorder %s22, 0
      %p132 = por %p130, %p131
      %p133 = scmp.ne.s32.totalorder %s119, %s120
      %p134 = scmp.eq.s32.totalorder %s23, 1
      %p135 = por %p133, %p134
      %p137 = scmp.ne.s32.totalorder %s120, %s136
      %p138 = scmp.eq.s32.totalorder %s23, 0
      %p139 = por %p137, %p138
      %s140 = ssub.s32 %s24, %s43
      %s141 = ssub.s32 %s25, %s39
      %s142 = sor.u32 %s140, %s141
      %p143 = scmp.eq.s32.totalorder %s142, 0
      %s145 = sadd.s32 %s144, 1
      %s146 = scalar_select %p143, %s144, %s145
      %p149 = pneg %p143
      %p150 = scmp.eq.s32.totalorder %s17, 1
      %p151 = por %p149, %p150
      %p152 = scmp.ne.s32.totalorder %s144, %s147
      %p153 = scmp.eq.s32.totalorder %s17, 0
      %p154 = por %p152, %p153
      %p155 = scmp.ne.s32.totalorder %s144, %s147
      %p156 = scmp.eq.s32.totalorder %s22, 1
      %p157 = por %p155, %p156
      %p158 = scmp.ne.s32.totalorder %s147, %s148
      %p159 = scmp.eq.s32.totalorder %s22, 0
      %p160 = por %p158, %p159
      %p161 = scmp.ne.s32.totalorder %s147, %s148
      %p162 = scmp.eq.s32.totalorder %s23, 1
      %p163 = por %p161, %p162
      %p165 = scmp.ne.s32.totalorder %s148, %s164
      %p166 = scmp.eq.s32.totalorder %s23, 0
      %p167 = por %p165, %p166
      %s168 = ssub.s32 %s24, %s43
      %s169 = ssub.s32 %s25, %s39
      %s170 = sor.u32 %s168, %s169
      %p171 = scmp.eq.s32.totalorder %s170, 0
      %s173 = sadd.s32 %s172, 1
      %s174 = scalar_select %p171, %s172, %s173
      %p177 = pneg %p171
      %p178 = scmp.eq.s32.totalorder %s17, 1
      %p179 = por %p177, %p178
      %p180 = scmp.ne.s32.totalorder %s172, %s175
      %p181 = scmp.eq.s32.totalorder %s17, 0
      %p182 = por %p180, %p181
      %p183 = scmp.ne.s32.totalorder %s172, %s175
      %p184 = scmp.eq.s32.totalorder %s22, 1
      %p185 = por %p183, %p184
      %p186 = scmp.ne.s32.totalorder %s175, %s176
      %p187 = scmp.eq.s32.totalorder %s22, 0
      %p188 = por %p186, %p187
      %p189 = scmp.ne.s32.totalorder %s175, %s176
      %p190 = scmp.eq.s32.totalorder %s23, 1
      %p191 = por %p189, %p190
      %p193 = scmp.ne.s32.totalorder %s176, %s192
      %p194 = scmp.eq.s32.totalorder %s23, 0
      %p195 = por %p193, %p194
      %p196 = scmp.le.s32.totalorder 1, %s17
      %p197 = scmp.lt.s32.totalorder %s17, 3
      %p198 = pnand %p196, %p197
      %p199 = pneg %p198
      // Predicated region
      $region9: #{tpu_custom_call.1} parent=5 // pred_check
        _
      $region10: #{tpu_custom_call.1} parent=5 // pred_check_branch
        %201 = sbr.rel (%p198) target = $region12
      $region11: #{tpu_custom_call.1} parent=5 // pred_region
        %s202 = ssub.s32 %s17, 1
      $region12: #{tpu_custom_call.1} parent=5 // pred_fallthru
        _
      %p203 = scmp.lt.s32.totalorder %s17, 2
      // Predicated region
      $region13: #{tpu_custom_call.1} parent=5 // pred_check
        %p204 = pneg %p203
      $region14: #{tpu_custom_call.1} parent=5 // pred_check_branch
        %206 = sbr.rel (%p204) target = $region16
      $region15: #{tpu_custom_call.1} parent=5 // pred_region
        // Predicated region
        $region17: #{tpu_custom_call.1} parent=15 // pred_check
          %p207 = pneg %p64
        $region18: #{tpu_custom_call.1} parent=15 // pred_check_branch
          %209 = sbr.rel (%p207) target = $region20
        $region19: #{tpu_custom_call.1} parent=15 // pred_region
          %s210 = sand.u32 %s54, 1
          %s211 = scalar_lea.sflag [#allocation3], %s210
          %s212 = sand.u32 %s54, 1
          %s213 = smul.addr %s212, 80
          %s214 = scalar_lea.vmem [#allocation2], %s213
          %s215 = sadd.s32 %s25, %s26
          %p216 = scmp.lt.s32.totalorder %s215, 0
          %s217 = scalar_select %p216, %s215, 0
          %s218 = smul.u32 2, %s217
          %s220 = ssub.s32 1280, 1280
          %221 = vsyncadd %s211, %s220
          %s222 = smul.addr %s24, 10
          %s223 = sadd.s32 %s218, %s222
          %s224 = smul.addr %s223, 128
          %s225 = scalar_lea.hbm %s0, %s224
          %s226 = sshll.u32 %s214, 4
          %s227 = int_to_ptr.vmem [resolvable:$true] %s226
          %232 = dma.hbm_to_vmem [thread:$0]  %s225, 1280, %s227, %s211, 128, 128, 8
        $region20: #{tpu_custom_call.1} parent=15 // pred_fallthru
          _
        // Predicated region
        $region21: #{tpu_custom_call.1} parent=15 // pred_check
          %p233 = pneg %p98
        $region22: #{tpu_custom_call.1} parent=15 // pred_check_branch
          %235 = sbr.rel (%p233) target = $region24
        $region23: #{tpu_custom_call.1} parent=15 // pred_region
          %s236 = sand.u32 %s88, 1
          %s237 = scalar_lea.sflag [#allocation5], %s236
          %s238 = sand.u32 %s88, 1
          %s239 = smul.addr %s238, 4
          %s240 = scalar_lea.vmem [#allocation4], %s239
          %s241 = sadd.s32 %s25, %s26
          %p242 = scmp.lt.s32.totalorder %s241, 0
          %s243 = scalar_select %p242, %s241, 0
          %s244 = smul.u32 2, %s243
          %s246 = ssub.s32 64, 64
          %247 = vsyncadd %s237, %s246
          %s248 = smul.addr %s24, 2
          %s249 = sadd.s32 %s244, %s248
          %s250 = smul.addr %s249, 32
          %s251 = scalar_lea.hbm %s1, %s250
          %s252 = sshll.u32 %s240, 4
          %s253 = int_to_ptr.vmem [resolvable:$true] %s252
          %258 = dma.hbm_to_vmem [thread:$0]  %s251, 64, %s253, %s237, 32, 32, 2
        $region24: #{tpu_custom_call.1} parent=15 // pred_fallthru
          _
      $region16: #{tpu_custom_call.1} parent=5 // pred_fallthru
        _
      %p259 = scmp.le.s32.totalorder 1, %s17
      %p260 = scmp.lt.s32.totalorder %s17, 3
      %p261 = pnand %p259, %p260
      %p262 = pneg %p261
      // Predicated region
      $region25: #{tpu_custom_call.1} parent=5 // pred_check
        _
      $region26: #{tpu_custom_call.1} parent=5 // pred_check_branch
        %264 = sbr.rel (%p261) target = $region28
      $region27: #{tpu_custom_call.1} parent=5 // pred_region
        %s265 = ssub.s32 %s17, 1
        %s266 = sand.u32 %s57, 1
        %s267 = scalar_lea.sflag [#allocation3], %s266
        %s268 = sand.u32 %s57, 1
        %s269 = smul.addr %s268, 80
        %s270 = scalar_lea.vmem [#allocation2], %s269
        // Predicated region
        $region29: #{tpu_custom_call.1} parent=27 // pred_check
          %p271 = pneg %p70
        $region30: #{tpu_custom_call.1} parent=27 // pred_check_branch
          %273 = sbr.rel (%p271) target = $region32
        $region31: #{tpu_custom_call.1} parent=27 // pred_region
          %274 = dma.done %s267, 1280
        $region32: #{tpu_custom_call.1} parent=27 // pred_fallthru
          _
        %s275 = sand.u32 %s91, 1
        %s276 = scalar_lea.sflag [#allocation5], %s275
        %s277 = sand.u32 %s91, 1
        %s278 = smul.addr %s277, 4
        %s279 = scalar_lea.vmem [#allocation4], %s278
        // Predicated region
        $region33: #{tpu_custom_call.1} parent=27 // pred_check
          %p280 = pneg %p104
        $region34: #{tpu_custom_call.1} parent=27 // pred_check_branch
          %282 = sbr.rel (%p280) target = $region36
        $region35: #{tpu_custom_call.1} parent=27 // pred_region
          %283 = dma.done %s276, 64
        $region36: #{tpu_custom_call.1} parent=27 // pred_fallthru
          _
        %s284 = sand.u32 %s57, 1
        %s285 = scalar_lea.sflag [#allocation3], %s284
        %s286 = sand.u32 %s57, 1
        %s287 = smul.addr %s286, 80
        %s288 = scalar_lea.vmem [#allocation2], %s287
        %p289 = pneg %p70
        %p290 = pneg %p67
        %s291 = sand.u32 %s91, 1
        %s292 = scalar_lea.sflag [#allocation5], %s291
        %s293 = sand.u32 %s91, 1
        %s294 = smul.addr %s293, 4
        %s295 = scalar_lea.vmem [#allocation4], %s294
        %p296 = pneg %p104
        %p297 = pneg %p101
        %p298 = pneg %p132
        %p299 = pneg %p129
        %p300 = scmp.lt.s32.totalorder %s27, 1
        %s301 = scalar_select %p300, %s27, 1
        %p302 = scmp.lt.s32.totalorder %s28, 0
        %s303 = scalar_select %p302, %s28, 0
        %s304 = sadd.s32 %s303, %s301
        %s305 = smul.addr %s304, 8
        %s306 = scalar_lea.vmem %s2, %s305
        %p307 = pneg %p160
        %p308 = pneg %p157
        %p309 = scmp.lt.s32.totalorder %s27, 1
        %s310 = scalar_select %p309, %s27, 1
        %p311 = scmp.lt.s32.totalorder %s28, 0
        %s312 = scalar_select %p311, %s28, 0
        %s313 = sadd.s32 %s312, %s310
        %s314 = smul.addr %s313, 8
        %s315 = scalar_lea.vmem %s3, %s314
        %p316 = pneg %p188
        %p317 = pneg %p185
        %p318 = scmp.lt.s32.totalorder %s27, 1
        %s319 = scalar_select %p318, %s27, 1
        %p320 = scmp.lt.s32.totalorder %s28, 0
        %s321 = scalar_select %p320, %s28, 0
        %s322 = sadd.s32 %s321, %s319
        %s323 = smul.addr %s322, 8
        %s324 = scalar_lea.vmem %s4, %s323
        %s325 = sadd.s32 %s28, %s29
        %p326 = scmp.lt.s32.totalorder %s325, 0
        %s327 = scalar_select %p326, %s325, 0
        %s328 = smul.u32 2, %s327
        %s329 = sadd.s32 %s28, %s29
        %p330 = scmp.lt.s32.totalorder %s329, 0
        %s331 = scalar_select %p330, %s329, 0
        %s332 = smul.u32 2, %s331
        %p333 = scmp.lt.s32.totalorder %s27, 1
        %s334 = scalar_select %p333, %s27, 1
        %p335 = scmp.lt.s32.totalorder %s28, 0
        %s336 = scalar_select %p335, %s28, 0
        %s337 = sadd.s32 %s336, %s334
        %s338 = smul.addr %s337, 8
        %s339 = scalar_lea.vmem %s2, %s338
        %p340 = scmp.lt.s32.totalorder %s27, 1
        %s341 = scalar_select %p340, %s27, 1
        %p342 = scmp.lt.s32.totalorder %s28, 0
        %s343 = scalar_select %p342, %s28, 0
        %s344 = sadd.s32 %s343, %s341
        %s345 = smul.addr %s344, 8
        %s346 = scalar_lea.vmem %s3, %s345
        %p347 = scmp.lt.s32.totalorder %s27, 1
        %s348 = scalar_select %p347, %s27, 1
        %p349 = scmp.lt.s32.totalorder %s28, 0
        %s350 = scalar_select %p349, %s28, 0
        %s351 = sadd.s32 %s350, %s348
        %s352 = smul.addr %s351, 8
        %s353 = scalar_lea.vmem %s4, %s352
        %p354 = scmp.eq.s32.totalorder %s29, 0
        // Predicated region
        $region37: #{tpu_custom_call.1} parent=27 // pred_check
          %p355 = pneg %p354
        $region38: #{tpu_custom_call.1} parent=27 // pred_check_branch
          %357 = sbr.rel (%p355) target = $region40
        $region39: #{tpu_custom_call.1} parent=27 // pred_region
          %358 = vst [vmem:[%s339] sm:$0x1f] 0.0
          %359 = vst [vmem:[%s346] sm:$0x1f] 0.0
          %360 = vst [vmem:[%s353] sm:$0x1f] 0.0
        $region40: #{tpu_custom_call.1} parent=27 // pred_fallthru
          _
        %v361 = vld [vmem:[%s279] sm:$0x3]
        %v362 = vld [vmem:[%s279 + $0x2] sm:$0x3]
        %v363 = vunpack.c.0.s8 %v361
        %v364 = vunpack.c.0.s8 %v362
        %v365 = vld [vmem:[%s270] sm:$0xff]
        %v366 = vld [vmem:[%s270 + $0x8] sm:$0xff]
        %vm367 = vcmp.eq.s32.totalorder %v363, 0
        %vm368 = vcmp.eq.s32.totalorder %v364, 0
        %v369 = vsel %vm367, %v365, 0.0
        %v370 = vsel %vm368, %v366, 0.0
        %v371 = vadd.f32 %v369, %v370
        %v372 = vrot.slane %v371, 4
        %v373 = vadd.f32 %v371, %v372
        %v374 = vrot.slane %v373, 2
        %v375 = vadd.f32 %v373, %v374
        %v376 = vrot.slane %v375, 1
        %v377 = vadd.f32 %v375, %v376
        %v378 = vadd.f32 %v365, %v366
        %v379 = vrot.slane %v378, 4
        %v380 = vadd.f32 %v378, %v379
        %v381 = vrot.slane %v380, 2
        %v382 = vadd.f32 %v380, %v381
        %v383 = vrot.slane %v382, 1
        %v384 = vadd.f32 %v382, %v383
        %v385 = vsel %vm367, 1.0, 0.0
        %v386 = vsel %vm368, 1.0, 0.0
        %v387 = vadd.f32 %v385, %v386
        %v388 = vrot.slane %v387, 4
        %v389 = vadd.f32 %v387, %v388
        %v390 = vrot.slane %v389, 2
        %v391 = vadd.f32 %v389, %v390
        %v392 = vrot.slane %v391, 1
        %v393 = vadd.f32 %v391, %v392
        %s394 = scalar_lea.vmem %s270, 16 [#allocation2]
        %v395 = vld [vmem:[%s394] sm:$0xff]
        %v396 = vld [vmem:[%s394 + $0x8] sm:$0xff]
        %vm397 = vcmp.eq.s32.totalorder %v363, 1
        %vm398 = vcmp.eq.s32.totalorder %v364, 1
        %v399 = vsel %vm397, %v395, 0.0
        %v400 = vsel %vm398, %v396, 0.0
        %v401 = vadd.f32 %v399, %v400
        %v402 = vrot.slane %v401, 4
        %v403 = vadd.f32 %v401, %v402
        %v404 = vrot.slane %v403, 2
        %v405 = vadd.f32 %v403, %v404
        %v406 = vrot.slane %v405, 1
        %v407 = vadd.f32 %v405, %v406
        %v408 = vadd.f32 %v395, %v396
        %v409 = vrot.slane %v408, 4
        %v410 = vadd.f32 %v408, %v409
        %v411 = vrot.slane %v410, 2
        %v412 = vadd.f32 %v410, %v411
        %v413 = vrot.slane %v412, 1
        %v414 = vadd.f32 %v412, %v413
        %v415 = vsel %vm397, 1.0, 0.0
        %v416 = vsel %vm398, 1.0, 0.0
        %v417 = vadd.f32 %v415, %v416
        %v418 = vrot.slane %v417, 4
        %v419 = vadd.f32 %v417, %v418
        %v420 = vrot.slane %v419, 2
        %v421 = vadd.f32 %v419, %v420
        %v422 = vrot.slane %v421, 1
        %v423 = vadd.f32 %v421, %v422
        %s424 = scalar_lea.vmem %s270, 32 [#allocation2]
        %v425 = vld [vmem:[%s424] sm:$0xff]
        %v426 = vld [vmem:[%s424 + $0x8] sm:$0xff]
        %vm427 = vcmp.eq.s32.totalorder %v363, 2
        %vm428 = vcmp.eq.s32.totalorder %v364, 2
        %v429 = vsel %vm427, %v425, 0.0
        %v430 = vsel %vm428, %v426, 0.0
        %v431 = vadd.f32 %v429, %v430
        %v432 = vrot.slane %v431, 4
        %v433 = vadd.f32 %v431, %v432
        %v434 = vrot.slane %v433, 2
        %v435 = vadd.f32 %v433, %v434
        %v436 = vrot.slane %v435, 1
        %v437 = vadd.f32 %v435, %v436
        %v438 = vadd.f32 %v425, %v426
        %v439 = vrot.slane %v438, 4
        %v440 = vadd.f32 %v438, %v439
        %v441 = vrot.slane %v440, 2
        %v442 = vadd.f32 %v440, %v441
        %v443 = vrot.slane %v442, 1
        %v444 = vadd.f32 %v442, %v443
        %v445 = vsel %vm427, 1.0, 0.0
        %v446 = vsel %vm428, 1.0, 0.0
        %v447 = vadd.f32 %v445, %v446
        %v448 = vrot.slane %v447, 4
        %v449 = vadd.f32 %v447, %v448
        %v450 = vrot.slane %v449, 2
        %v451 = vadd.f32 %v449, %v450
        %v452 = vrot.slane %v451, 1
        %v453 = vadd.f32 %v451, %v452
        %s454 = scalar_lea.vmem %s270, 48 [#allocation2]
        %v455 = vld [vmem:[%s454] sm:$0xff]
        %v456 = vld [vmem:[%s454 + $0x8] sm:$0xff]
        %vm457 = vcmp.eq.s32.totalorder %v363, 3
        %vm458 = vcmp.eq.s32.totalorder %v364, 3
        %v459 = vsel %vm457, %v455, 0.0
        %v460 = vsel %vm458, %v456, 0.0
        %v461 = vadd.f32 %v459, %v460
        %v462 = vrot.slane %v461, 4
        %v463 = vadd.f32 %v461, %v462
        %v464 = vrot.slane %v463, 2
        %v465 = vadd.f32 %v463, %v464
        %v466 = vrot.slane %v465, 1
        %v467 = vadd.f32 %v465, %v466
        %v468 = vadd.f32 %v455, %v456
        %v469 = vrot.slane %v468, 4
        %v470 = vadd.f32 %v468, %v469
        %v471 = vrot.slane %v470, 2
        %v472 = vadd.f32 %v470, %v471
        %v473 = vrot.slane %v472, 1
        %v474 = vadd.f32 %v472, %v473
        %v475 = vsel %vm457, 1.0, 0.0
        %v476 = vsel %vm458, 1.0, 0.0
        %v477 = vadd.f32 %v475, %v476
        %v478 = vrot.slane %v477, 4
        %v479 = vadd.f32 %v477, %v478
        %v480 = vrot.slane %v479, 2
        %v481 = vadd.f32 %v479, %v480
        %v482 = vrot.slane %v481, 1
        %v483 = vadd.f32 %v481, %v482
        %s484 = scalar_lea.vmem %s270, 64 [#allocation2]
        %v485 = vld [vmem:[%s484] sm:$0xff]
        %v486 = vld [vmem:[%s484 + $0x8] sm:$0xff]
        %vm487 = vcmp.eq.s32.totalorder %v363, 4
        %vm488 = vcmp.eq.s32.totalorder %v364, 4
        %v489 = vsel %vm487, %v485, 0.0
        %v490 = vsel %vm488, %v486, 0.0
        %v491 = vadd.f32 %v489, %v490
        %v492 = vrot.slane %v491, 4
        %v493 = vadd.f32 %v491, %v492
        %v494 = vrot.slane %v493, 2
        %v495 = vadd.f32 %v493, %v494
        %v496 = vrot.slane %v495, 1
        %v497 = vadd.f32 %v495, %v496
        %v498 = vadd.f32 %v485, %v486
        %v499 = vrot.slane %v498, 4
        %v500 = vadd.f32 %v498, %v499
        %v501 = vrot.slane %v500, 2
        %v502 = vadd.f32 %v500, %v501
        %v503 = vrot.slane %v502, 1
        %v504 = vadd.f32 %v502, %v503
        %v505 = vsel %vm487, 1.0, 0.0
        %v506 = vsel %vm488, 1.0, 0.0
        %v507 = vadd.f32 %v505, %v506
        %v508 = vrot.slane %v507, 4
        %v509 = vadd.f32 %v507, %v508
        %v510 = vrot.slane %v509, 2
        %v511 = vadd.f32 %v509, %v510
        %v512 = vrot.slane %v511, 1
        %v513 = vadd.f32 %v511, %v512
        %v514 = vld [vmem:[%s339] sm:$0x1f]
        %vm515 = vcmask 1040384
        %v516 = vsel %vm515, %v377, %v407
        %vm517 = vcmask 1041408
        %v518 = vsel %vm517, %v516, %v437
        %vm519 = vcmask 1042432
        %v520 = vsel %vm519, %v518, %v467
        %vm521 = vcmask 1043456
        %v522 = vsel %vm521, %v520, %v497
        %v523 = vadd.f32 %v514, %v522
        %524 = vst [vmem:[%s339] sm:$0x1f] %v523
        %v525 = vld [vmem:[%s346] sm:$0x1f]
        %v526 = vsel %vm515, %v384, %v414
        %v527 = vsel %vm517, %v526, %v444
        %v528 = vsel %vm519, %v527, %v474
        %v529 = vsel %vm521, %v528, %v504
        %v530 = vadd.f32 %v525, %v529
        %531 = vst [vmem:[%s346] sm:$0x1f] %v530
        %v532 = vld [vmem:[%s353] sm:$0x1f]
        %v533 = vsel %vm515, %v393, %v423
        %v534 = vsel %vm517, %v533, %v453
        %v535 = vsel %vm519, %v534, %v483
        %v536 = vsel %vm521, %v535, %v513
        %v537 = vadd.f32 %v532, %v536
        %538 = vst [vmem:[%s353] sm:$0x1f] %v537
        %p539 = scmp.lt.s32.totalorder %s27, 1
        %s540 = scalar_select %p539, %s27, 1
        %p541 = scmp.lt.s32.totalorder %s28, 0
        %s542 = scalar_select %p541, %s28, 0
        %s543 = sadd.s32 %s542, %s540
        %s544 = smul.addr %s543, 8
        %s545 = scalar_lea.vmem %s2, %s544
        %p546 = scmp.lt.s32.totalorder %s27, 1
        %s547 = scalar_select %p546, %s27, 1
        %p548 = scmp.lt.s32.totalorder %s28, 0
        %s549 = scalar_select %p548, %s28, 0
        %s550 = sadd.s32 %s549, %s547
        %s551 = smul.addr %s550, 8
        %s552 = scalar_lea.vmem %s3, %s551
        %p553 = scmp.lt.s32.totalorder %s27, 1
        %s554 = scalar_select %p553, %s27, 1
        %p555 = scmp.lt.s32.totalorder %s28, 0
        %s556 = scalar_select %p555, %s28, 0
        %s557 = sadd.s32 %s556, %s554
        %s558 = smul.addr %s557, 8
        %s559 = scalar_lea.vmem %s4, %s558
        // Predicated region
        $region41: #{tpu_custom_call.1} parent=27 // pred_check
          %p560 = pneg %p129
        $region42: #{tpu_custom_call.1} parent=27 // pred_check_branch
          %562 = sbr.rel (%p560) target = $region44
        $region43: #{tpu_custom_call.1} parent=27 // pred_region
          _
        $region44: #{tpu_custom_call.1} parent=27 // pred_fallthru
          _
        // Predicated region
        $region45: #{tpu_custom_call.1} parent=27 // pred_check
          %p563 = pneg %p157
        $region46: #{tpu_custom_call.1} parent=27 // pred_check_branch
          %565 = sbr.rel (%p563) target = $region48
        $region47: #{tpu_custom_call.1} parent=27 // pred_region
          _
        $region48: #{tpu_custom_call.1} parent=27 // pred_fallthru
          _
        // Predicated region
        $region49: #{tpu_custom_call.1} parent=27 // pred_check
          %p566 = pneg %p185
        $region50: #{tpu_custom_call.1} parent=27 // pred_check_branch
          %568 = sbr.rel (%p566) target = $region52
        $region51: #{tpu_custom_call.1} parent=27 // pred_region
          _
        $region52: #{tpu_custom_call.1} parent=27 // pred_fallthru
          _
      $region28: #{tpu_custom_call.1} parent=5 // pred_fallthru
        _
      %p569 = scmp.le.s32.totalorder 2, %s17
      // Predicated region
      $region53: #{tpu_custom_call.1} parent=5 // pred_check
        %p570 = pneg %p569
      $region54: #{tpu_custom_call.1} parent=5 // pred_check_branch
        %572 = sbr.rel (%p570) target = $region56
      $region55: #{tpu_custom_call.1} parent=5 // pred_region
        %s573 = ssub.s32 %s17, 2
        // Predicated region
        $region57: #{tpu_custom_call.1} parent=55 // pred_check
          %p574 = pneg %p135
        $region58: #{tpu_custom_call.1} parent=55 // pred_check_branch
          %576 = sbr.rel (%p574) target = $region60
        $region59: #{tpu_custom_call.1} parent=55 // pred_region
          %p577 = scmp.lt.s32.totalorder %s30, 1
          %s578 = scalar_select %p577, %s30, 1
          %p579 = scmp.lt.s32.totalorder %s31, 0
          %s580 = scalar_select %p579, %s31, 0
          %s581 = sadd.s32 %s580, %s578
          %s582 = smul.addr %s581, 8
          %s583 = scalar_lea.vmem %s2, %s582
        $region60: #{tpu_custom_call.1} parent=55 // pred_fallthru
          _
        // Predicated region
        $region61: #{tpu_custom_call.1} parent=55 // pred_check
          %p584 = pneg %p163
        $region62: #{tpu_custom_call.1} parent=55 // pred_check_branch
          %586 = sbr.rel (%p584) target = $region64
        $region63: #{tpu_custom_call.1} parent=55 // pred_region
          %p587 = scmp.lt.s32.totalorder %s30, 1
          %s588 = scalar_select %p587, %s30, 1
          %p589 = scmp.lt.s32.totalorder %s31, 0
          %s590 = scalar_select %p589, %s31, 0
          %s591 = sadd.s32 %s590, %s588
          %s592 = smul.addr %s591, 8
          %s593 = scalar_lea.vmem %s3, %s592
        $region64: #{tpu_custom_call.1} parent=55 // pred_fallthru
          _
        // Predicated region
        $region65: #{tpu_custom_call.1} parent=55 // pred_check
          %p594 = pneg %p191
        $region66: #{tpu_custom_call.1} parent=55 // pred_check_branch
          %596 = sbr.rel (%p594) target = $region68
        $region67: #{tpu_custom_call.1} parent=55 // pred_region
          %p597 = scmp.lt.s32.totalorder %s30, 1
          %s598 = scalar_select %p597, %s30, 1
          %p599 = scmp.lt.s32.totalorder %s31, 0
          %s600 = scalar_select %p599, %s31, 0
          %s601 = sadd.s32 %s600, %s598
          %s602 = smul.addr %s601, 8
          %s603 = scalar_lea.vmem %s4, %s602
        $region68: #{tpu_custom_call.1} parent=55 // pred_fallthru
          _
      $region56: #{tpu_custom_call.1} parent=5 // pred_fallthru
        _
    $region6: #{tpu_custom_call.1} parent=1 // loop_footer
      %s21 = sadd.s32 1, %s17
    $region7: #{tpu_custom_call.1} parent=1 // loop_footer_branch
      %16 = sbr.rel target = $region3
    $region8: #{tpu_custom_call.1} parent=1 // loop_exit
      _
    %604 = vsyncpa [#allocation3], 1
    %s605 = scalar_lea.sflag [#allocation3], 1
    %606 = vsyncpa %s605, 1
    %607 = vsyncpa [#allocation5], 1
    %s608 = scalar_lea.sflag [#allocation5], 1
    %609 = vsyncpa %s608, 1

</llo_original>
